<compile_context>
chip_gen: v6e
topology: v6e:2x2x1
jax: 0.10.0
libtpu: 0.0.40
codegen_flags: <defaults>
</compile_context>

<pallas_src>
import functools

import jax
import jax.numpy as jnp
from jax import lax
from jax.experimental import pallas as pl
from jax.experimental.pallas import tpu as pltpu

EMBED_DIM = 8
NUM_HEADS = 2
HEAD_DIM = EMBED_DIM // NUM_HEADS
SEQ_LEN = 4
BATCH = 1

_SUBLANE = 8    # f32 sublane tile
_LANE = 128     # lane tile


def _round_up(x, m):
    return (x + m - 1) // m * m


def _self_attention_kernel(x_ref, wqkv_ref, bqkv_ref, wo_ref, bo_ref, o_ref,
                           *, seq, dh_pad):
    """One (batch, head) grid step.

    x_ref    : (Sp, Ep)     bf16  padded input rows of this batch
    wqkv_ref : (Ep, 3*Dhp)  bf16  this head's packed [Q|K|V] weights
    bqkv_ref : (1, 3*Dhp)   f32   this head's packed [Q|K|V] bias
    wo_ref   : (Dhp, Ep)    bf16  this head's rows of the output projection
    bo_ref   : (1, Ep)      f32   output-projection bias (added once, at h==0)
    o_ref    : (Sp, Ep)     f32   resident output block, accumulated over heads
    """
    h = pl.program_id(1)

    x = x_ref[...]                                              # (Sp, Ep) bf16

    # Fused per-head QKV projection: ONE MXU pass, f32 accumulation.
    qkv = jnp.dot(x, wqkv_ref[...],
                  preferred_element_type=jnp.float32) + bqkv_ref[...]
    q = qkv[:, :dh_pad]                    # (Sp, Dhp); 1/sqrt(Dh) pre-folded
    k = qkv[:, dh_pad:2 * dh_pad]          # 128-aligned lane slices (free)
    v = qkv[:, 2 * dh_pad:]

    # scores = q @ k^T: contract the shared last axis (no transpose), bf16->f32.
    scores = lax.dot_general(
        q.astype(jnp.bfloat16), k.astype(jnp.bfloat16),
        (((1,), (1,)), ((), ())),
        preferred_element_type=jnp.float32)                     # (Sp, Sp)

    # Mask the zero-padded key rows (index >= seq) out of the softmax.
    key_idx = lax.broadcasted_iota(jnp.int32, scores.shape, 1)
    scores = jnp.where(key_idx < seq, scores, -1e30)

    # Softmax in f32 (keep vector math f32 for v5e); reciprocal on the EUP.
    m = jnp.max(scores, axis=-1, keepdims=True)
    e = jnp.exp(scores - m)
    denom = jnp.sum(e, axis=-1, keepdims=True)
    attn = e * pl.reciprocal(denom, approx=True)

    # attn @ V and this head's slice of the output projection (bf16 MXU inputs).
    ws = jnp.dot(attn.astype(jnp.bfloat16), v.astype(jnp.bfloat16),
                 preferred_element_type=jnp.float32)            # (Sp, Dhp)
    partial = jnp.dot(ws.astype(jnp.bfloat16), wo_ref[...],
                      preferred_element_type=jnp.float32)       # (Sp, Ep)

    # Accumulate heads into the resident output block (lane-dense (8,128) store).
    @pl.when(h == 0)
    def _():
        o_ref[...] = partial + bo_ref[...]

    @pl.when(h != 0)
    def _():
        o_ref[...] = o_ref[...] + partial


def pack_params(wq, bq, wk, bk, wv, bv, wo, bo, *, num_heads):
    """One-time host-side packing — do NOT call per forward step.

    Weights are (in, out) == torch weight.T; biases are (1, E).
    Returns padded, head-blocked params:
      wqkv: (H, Ep, 3*Dhp) bf16    bqkv: (H, 1, 3*Dhp) f32
      wo  : (H, Dhp, Ep)   bf16    bo  : (1, Ep)       f32
    The 1/sqrt(Dh) attention scale is folded into the Q weights/bias.
    """
    embed = wq.shape[0]
    dh = embed // num_heads
    e_pad = _round_up(embed, _LANE)
    dh_pad = _round_up(dh, _LANE)
    scale = 1.0 / (dh ** 0.5)

    def _heads_out(w, b, s):
        wh = (w * s).reshape(embed, num_heads, dh)
        wh = jnp.pad(wh, ((0, e_pad - embed), (0, 0), (0, dh_pad - dh)))
        wh = jnp.transpose(wh, (1, 0, 2))                       # (H, Ep, Dhp)
        bh = (b * s).reshape(num_heads, 1, dh)
        bh = jnp.pad(bh, ((0, 0), (0, 0), (0, dh_pad - dh)))    # (H, 1, Dhp)
        return wh, bh

    wq_h, bq_h = _heads_out(wq, bq, scale)    # scale folded into Q only
    wk_h, bk_h = _heads_out(wk, bk, 1.0)
    wv_h, bv_h = _heads_out(wv, bv, 1.0)

    wqkv = jnp.concatenate([wq_h, wk_h, wv_h], axis=2)          # (H, Ep, 3*Dhp)
    bqkv = jnp.concatenate([bq_h, bk_h, bv_h], axis=2)          # (H, 1, 3*Dhp)

    wo_h = wo.reshape(num_heads, dh, embed)
    wo_h = jnp.pad(wo_h, ((0, 0), (0, dh_pad - dh), (0, e_pad - embed)))
    bo_p = jnp.pad(bo, ((0, 0), (0, e_pad - embed)))

    return {
        "wqkv": wqkv.astype(jnp.bfloat16),
        "bqkv": bqkv.astype(jnp.float32),
        "wo": wo_h.astype(jnp.bfloat16),
        "bo": bo_p.astype(jnp.float32),
    }


@jax.jit
def self_attention(x, params):
    """x: (B, S, E) f32; params from pack_params. Returns (B, S, E) f32."""
    B, S, E = x.shape
    wqkv = params["wqkv"]
    H, e_pad, three_dhp = wqkv.shape
    dh_pad = three_dhp // 3
    s_pad = _round_up(S, _SUBLANE)

    # Zero-pad to (8,128)-dense tiles; cast the MXU operand to bf16.
    x_pad = jnp.pad(x, ((0, 0), (0, s_pad - S), (0, e_pad - E)))
    x_pad = x_pad.astype(jnp.bfloat16)

    kernel = functools.partial(_self_attention_kernel, seq=S, dh_pad=dh_pad)

    out_pad = pl.pallas_call(
        kernel,
        out_shape=jax.ShapeDtypeStruct((B, s_pad, e_pad), jnp.float32),
        grid_spec=pltpu.PrefetchScalarGridSpec(
            num_scalar_prefetch=0,
            grid=(B, H),                      # head (reduction) axis last
            in_specs=[
                pl.BlockSpec((None, s_pad, e_pad), lambda b, h: (b, 0, 0)),
                pl.BlockSpec((None, e_pad, 3 * dh_pad), lambda b, h: (h, 0, 0)),
                pl.BlockSpec((None, 1, 3 * dh_pad), lambda b, h: (h, 0, 0)),
                pl.BlockSpec((None, dh_pad, e_pad), lambda b, h: (h, 0, 0)),
                pl.BlockSpec((1, e_pad), lambda b, h: (0, 0)),
            ],
            out_specs=pl.BlockSpec((None, s_pad, e_pad), lambda b, h: (b, 0, 0)),
        ),
        compiler_params=pltpu.CompilerParams(
            # batch axis shardable across v7x's two TensorCores; head axis is a
            # reduction into the resident output block.
            dimension_semantics=("parallel", "arbitrary"),
            vmem_limit_bytes=32 * 1024 * 1024,
        ),
    )(x_pad, params["wqkv"], params["bqkv"], params["wo"], params["bo"])

    return out_pad[:, :S, :E]


def reference(x, wq, bq, wk, bk, wv, bv, wo, bo, num_heads=NUM_HEADS):
    B, S, E = x.shape
    Dh = E // num_heads
    q = x @ wq + bq
    k = x @ wk + bk
    v = x @ wv + bv
    q = q.reshape(B, S, num_heads, Dh).transpose(0, 2, 1, 3)
    k = k.reshape(B, S, num_heads, Dh).transpose(0, 2, 1, 3)
    v = v.reshape(B, S, num_heads, Dh).transpose(0, 2, 1, 3)
    scores = jnp.einsum("bhqd,bhkd->bhqk", q, k) / jnp.sqrt(jnp.float32(Dh))
    attn = jax.nn.softmax(scores, axis=-1)
    ws = jnp.einsum("bhqk,bhkd->bhqd", attn, v)
    ws = ws.transpose(0, 2, 1, 3).reshape(B, S, E)
    return ws @ wo + bo


if __name__ == "__main__":
    key = jax.random.PRNGKey(0)
    keys = jax.random.split(key, 9)

    # Deterministic synthetic params (shapes match nn.Linear(E, E)).
    # Weights stored as (in, out) == torch weight.T
    wq = jax.random.normal(keys[0], (EMBED_DIM, EMBED_DIM), jnp.float32) * 0.1
    wk = jax.random.normal(keys[1], (EMBED_DIM, EMBED_DIM), jnp.float32) * 0.1
    wv = jax.random.normal(keys[2], (EMBED_DIM, EMBED_DIM), jnp.float32) * 0.1
    wo = jax.random.normal(keys[3], (EMBED_DIM, EMBED_DIM), jnp.float32) * 0.1
    bq = jax.random.normal(keys[4], (1, EMBED_DIM), jnp.float32) * 0.1
    bk = jax.random.normal(keys[5], (1, EMBED_DIM), jnp.float32) * 0.1
    bv = jax.random.normal(keys[6], (1, EMBED_DIM), jnp.float32) * 0.1
    bo = jax.random.normal(keys[7], (1, EMBED_DIM), jnp.float32) * 0.1

    # Input: torch.rand(1, seq_length, embed_dim) -> uniform [0, 1)
    x = jax.random.uniform(keys[8], (BATCH, SEQ_LEN, EMBED_DIM), jnp.float32)

    # Pack / pad / cast the weights ONCE (outside the per-call path).
    params = pack_params(wq, bq, wk, bk, wv, bv, wo, bo, num_heads=NUM_HEADS)
    params = jax.tree_util.tree_map(jax.block_until_ready, params)

    out = self_attention(x, params)
    out = jax.block_until_ready(out)

    ref = reference(x, wq, bq, wk, bk, wv, bv, wo, bo)
    assert out.shape == (BATCH, SEQ_LEN, EMBED_DIM)
    # Tolerance covers bf16 MXU operands + the approximate (EUP) reciprocal in
    # the softmax; the reference is pure f32.
    assert jnp.allclose(out, ref, atol=1e-2, rtol=1e-2), "mismatch vs reference"

    print("KERNEL_OK")
</pallas_src>

<mosaic_0001>
module attributes {stable_mosaic.version = 11 : i64} {
  func.func @_self_attention_kernel(%arg0: i32, %arg1: i32, %arg2: memref<1x8x128xbf16, #tpu.memory_space<vmem>>, %arg3: memref<1x128x384xbf16, #tpu.memory_space<vmem>>, %arg4: memref<1x1x384xf32, #tpu.memory_space<vmem>>, %arg5: memref<1x128x128xbf16, #tpu.memory_space<vmem>>, %arg6: memref<1x128xf32, #tpu.memory_space<vmem>>, %arg7: memref<1x8x128xf32, #tpu.memory_space<vmem>>) attributes {dimension_semantics = [#tpu.dimension_semantics<parallel>, #tpu.dimension_semantics<arbitrary>], iteration_bounds = array<i64: 1, 2>, scalar_prefetch = 0 : i64, scratch_operands = 0 : i64, tpu.core_type = #tpu.core_type<tc>, window_params = [{transform_indices = @transform_0, window_bounds = array<i64: 1, 8, 128>}, {transform_indices = @transform_1, window_bounds = array<i64: 1, 128, 384>}, {transform_indices = @transform_2, window_bounds = array<i64: 1, 1, 384>}, {transform_indices = @transform_3, window_bounds = array<i64: 1, 128, 128>}, {pipeline_mode = #tpu.pipeline_mode<synchronous>, transform_indices = @transform_4, window_bounds = array<i64: 1, 128>}, {transform_indices = @transform_5, window_bounds = array<i64: 1, 8, 128>}]} {
    %c0 = arith.constant 0 : index
    %c0_0 = arith.constant 0 : index
    %c0_1 = arith.constant 0 : index
    %0 = vector.load %arg2[%c0, %c0_0, %c0_1] : memref<1x8x128xbf16, #tpu.memory_space<vmem>>, vector<1x8x128xbf16>
    %1 = vector.shape_cast %0 : vector<1x8x128xbf16> to vector<8x128xbf16>
    %c0_2 = arith.constant 0 : index
    %c0_3 = arith.constant 0 : index
    %c0_4 = arith.constant 0 : index
    %2 = vector.load %arg3[%c0_2, %c0_3, %c0_4] : memref<1x128x384xbf16, #tpu.memory_space<vmem>>, vector<1x128x384xbf16>
    %3 = vector.shape_cast %2 : vector<1x128x384xbf16> to vector<128x384xbf16>
    %cst = arith.constant dense<0.000000e+00> : vector<8x384xf32>
    %4 = tpu.matmul %1, %3, %cst {dimension_numbers = #tpu.dot_dimension_numbers<[1], [0], [0], [1], [0, 0, 1, 1], [], []>} : vector<8x128xbf16>, vector<128x384xbf16>, vector<8x384xf32> -> vector<8x384xf32>
    %c0_5 = arith.constant 0 : index
    %c0_6 = arith.constant 0 : index
    %c0_7 = arith.constant 0 : index
    %5 = vector.load %arg4[%c0_5, %c0_6, %c0_7] : memref<1x1x384xf32, #tpu.memory_space<vmem>>, vector<1x1x384xf32>
    %6 = vector.shape_cast %5 : vector<1x1x384xf32> to vector<1x384xf32>
    %7 = vector.broadcast %6 : vector<1x384xf32> to vector<8x384xf32>
    %8 = arith.addf %4, %7 : vector<8x384xf32>
    %9 = vector.extract_strided_slice %8 {offsets = [0, 0], sizes = [8, 128], strides = [1, 1]} : vector<8x384xf32> to vector<8x128xf32>
    %10 = vector.extract_strided_slice %8 {offsets = [0, 128], sizes = [8, 128], strides = [1, 1]} : vector<8x384xf32> to vector<8x128xf32>
    %11 = vector.extract_strided_slice %8 {offsets = [0, 256], sizes = [8, 128], strides = [1, 1]} : vector<8x384xf32> to vector<8x128xf32>
    %12 = arith.truncf %9 : vector<8x128xf32> to vector<8x128xbf16>
    %13 = arith.truncf %10 : vector<8x128xf32> to vector<8x128xbf16>
    %cst_8 = arith.constant dense<0.000000e+00> : vector<8x8xf32>
    %14 = tpu.matmul %12, %13, %cst_8 {dimension_numbers = #tpu.dot_dimension_numbers<[1], [1], [0], [0], [0, 0, 1, 0], [], []>} : vector<8x128xbf16>, vector<8x128xbf16>, vector<8x8xf32> -> vector<8x8xf32>
    %15 = tpu.iota {dimensions = array<i32: 1>} : vector<8x8xi32>
    %c4_i32 = arith.constant 4 : i32
    %16 = vector.broadcast %c4_i32 : i32 to vector<8x8xi32>
    %17 = arith.cmpi slt, %15, %16 : vector<8x8xi32>
    %cst_9 = arith.constant -1.000000e+30 : f32
    %18 = vector.broadcast %cst_9 : f32 to vector<8x8xf32>
    %19 = arith.select %17, %14, %18 : vector<8x8xi1>, vector<8x8xf32>
    %cst_10 = arith.constant dense<0xFF800000> : vector<8xf32>
    %20 = vector.multi_reduction <maximumf>, %19, %cst_10 [1] : vector<8x8xf32> to vector<8xf32>
    %21 = vector.shape_cast %20 : vector<8xf32> to vector<8x1xf32>
    %22 = vector.broadcast %21 : vector<8x1xf32> to vector<8x8xf32>
    %23 = arith.subf %19, %22 : vector<8x8xf32>
    %24 = math.exp %23 : vector<8x8xf32>
    %cst_11 = arith.constant dense<0.000000e+00> : vector<8xf32>
    %25 = vector.multi_reduction <add>, %24, %cst_11 [1] : vector<8x8xf32> to vector<8xf32>
    %26 = vector.shape_cast %25 : vector<8xf32> to vector<8x1xf32>
    %27 = tpu.reciprocal %26 {approx = true} : vector<8x1xf32> -> vector<8x1xf32>
    %28 = vector.broadcast %27 : vector<8x1xf32> to vector<8x8xf32>
    %29 = arith.mulf %24, %28 : vector<8x8xf32>
    %30 = arith.truncf %29 : vector<8x8xf32> to vector<8x8xbf16>
    %31 = arith.truncf %11 : vector<8x128xf32> to vector<8x128xbf16>
    %cst_12 = arith.constant dense<0.000000e+00> : vector<8x128xf32>
    %32 = tpu.matmul %30, %31, %cst_12 {dimension_numbers = #tpu.dot_dimension_numbers<[1], [0], [0], [1], [0, 0, 1, 1], [], []>} : vector<8x8xbf16>, vector<8x128xbf16>, vector<8x128xf32> -> vector<8x128xf32>
    %33 = arith.truncf %32 : vector<8x128xf32> to vector<8x128xbf16>
    %c0_13 = arith.constant 0 : index
    %c0_14 = arith.constant 0 : index
    %c0_15 = arith.constant 0 : index
    %34 = vector.load %arg5[%c0_13, %c0_14, %c0_15] : memref<1x128x128xbf16, #tpu.memory_space<vmem>>, vector<1x128x128xbf16>
    %35 = vector.shape_cast %34 : vector<1x128x128xbf16> to vector<128x128xbf16>
    %cst_16 = arith.constant dense<0.000000e+00> : vector<8x128xf32>
    %36 = tpu.matmul %33, %35, %cst_16 {dimension_numbers = #tpu.dot_dimension_numbers<[1], [0], [0], [1], [0, 0, 1, 1], [], []>} : vector<8x128xbf16>, vector<128x128xbf16>, vector<8x128xf32> -> vector<8x128xf32>
    %c0_i32 = arith.constant 0 : i32
    %37 = arith.cmpi eq, %arg1, %c0_i32 : i32
    %38 = arith.extui %37 : i1 to i32
    %c0_i32_17 = arith.constant 0 : i32
    %39 = arith.cmpi ne, %38, %c0_i32_17 : i32
    scf.if %39 {
      %c0_20 = arith.constant 0 : index
      %c0_21 = arith.constant 0 : index
      %43 = vector.load %arg6[%c0_20, %c0_21] : memref<1x128xf32, #tpu.memory_space<vmem>>, vector<1x128xf32>
      %44 = vector.broadcast %43 : vector<1x128xf32> to vector<8x128xf32>
      %45 = arith.addf %36, %44 : vector<8x128xf32>
      %c0_22 = arith.constant 0 : index
      %c0_23 = arith.constant 0 : index
      %c0_24 = arith.constant 0 : index
      %46 = vector.load %arg7[%c0_22, %c0_23, %c0_24] : memref<1x8x128xf32, #tpu.memory_space<vmem>>, vector<1x8x128xf32>
      %47 = vector.shape_cast %46 : vector<1x8x128xf32> to vector<8x128xf32>
      %48 = vector.shape_cast %45 : vector<8x128xf32> to vector<1x8x128xf32>
      tpu.vector_store %arg7[%c0_22, %c0_23, %c0_24], %48 {strides = array<i32>} : memref<1x8x128xf32, #tpu.memory_space<vmem>>, vector<1x8x128xf32>,
    } else {
    }
    %c0_i32_18 = arith.constant 0 : i32
    %40 = arith.cmpi ne, %arg1, %c0_i32_18 : i32
    %41 = arith.extui %40 : i1 to i32
    %c0_i32_19 = arith.constant 0 : i32
    %42 = arith.cmpi ne, %41, %c0_i32_19 : i32
    scf.if %42 {
      %c0_20 = arith.constant 0 : index
      %c0_21 = arith.constant 0 : index
      %c0_22 = arith.constant 0 : index
      %43 = vector.load %arg7[%c0_20, %c0_21, %c0_22] : memref<1x8x128xf32, #tpu.memory_space<vmem>>, vector<1x8x128xf32>
      %44 = vector.shape_cast %43 : vector<1x8x128xf32> to vector<8x128xf32>
      %45 = arith.addf %44, %36 : vector<8x128xf32>
      %c0_23 = arith.constant 0 : index
      %c0_24 = arith.constant 0 : index
      %c0_25 = arith.constant 0 : index
      %46 = vector.load %arg7[%c0_23, %c0_24, %c0_25] : memref<1x8x128xf32, #tpu.memory_space<vmem>>, vector<1x8x128xf32>
      %47 = vector.shape_cast %46 : vector<1x8x128xf32> to vector<8x128xf32>
      %48 = vector.shape_cast %45 : vector<8x128xf32> to vector<1x8x128xf32>
      tpu.vector_store %arg7[%c0_23, %c0_24, %c0_25], %48 {strides = array<i32>} : memref<1x8x128xf32, #tpu.memory_space<vmem>>, vector<1x8x128xf32>,
    } else {
    }
    return
  }
  func.func @transform_0(%arg0: i32, %arg1: i32) -> (i32, i32, i32) {
    %c0_i32 = arith.constant 0 : i32
    %c0_i32_0 = arith.constant 0 : i32
    %c0_i32_1 = arith.constant 0 : i32
    return %arg0, %c0_i32, %c0_i32_0 : i32, i32, i32
  }
  func.func @transform_1(%arg0: i32, %arg1: i32) -> (i32, i32, i32) {
    %c0_i32 = arith.constant 0 : i32
    %c0_i32_0 = arith.constant 0 : i32
    %c0_i32_1 = arith.constant 0 : i32
    return %arg1, %c0_i32, %c0_i32_0 : i32, i32, i32
  }
  func.func @transform_2(%arg0: i32, %arg1: i32) -> (i32, i32, i32) {
    %c0_i32 = arith.constant 0 : i32
    %c0_i32_0 = arith.constant 0 : i32
    %c0_i32_1 = arith.constant 0 : i32
    return %arg1, %c0_i32, %c0_i32_0 : i32, i32, i32
  }
  func.func @transform_3(%arg0: i32, %arg1: i32) -> (i32, i32, i32) {
    %c0_i32 = arith.constant 0 : i32
    %c0_i32_0 = arith.constant 0 : i32
    %c0_i32_1 = arith.constant 0 : i32
    return %arg1, %c0_i32, %c0_i32_0 : i32, i32, i32
  }
  func.func @transform_4(%arg0: i32, %arg1: i32) -> (i32, i32) {
    %c0_i32 = arith.constant 0 : i32
    %c0_i32_0 = arith.constant 0 : i32
    %c0_i32_1 = arith.constant 0 : i32
    return %c0_i32, %c0_i32_0 : i32, i32
  }
  func.func @transform_5(%arg0: i32, %arg1: i32) -> (i32, i32, i32) {
    %c0_i32 = arith.constant 0 : i32
    %c0_i32_0 = arith.constant 0 : i32
    %c0_i32_1 = arith.constant 0 : i32
    return %arg0, %c0_i32, %c0_i32_0 : i32, i32, i32
  }
}

</mosaic_0001>

<llo_original>
// kernel: self_attention.1
$region0: #{self_attention.1}
  #allocation0 [shape = 'u32[]', space=smem, size = 0x4, offset = 0x4, fixed_abs, tag = 'smem constant byte address 0x4 - core index']
  #allocation1 [shape = 'u32[144,128]{1,0:T(1,128)}', space=vmem, size = 0x12000, scoped, tag = 'internal scratch']
  %s0 = inlined_call_operand.vmem [shape: bf16[1,8,128], index: 0, kind: input, shape index: {}]
  %s1 = inlined_call_operand.hbm [shape: bf16[2,128,384], index: 1, kind: input, shape index: {}]
  %s2 = inlined_call_operand.vmem [shape: f32[2,1,384], index: 2, kind: input, shape index: {}]
  %s3 = inlined_call_operand.hbm [shape: bf16[2,128,128], index: 3, kind: input, shape index: {}]
  %s4 = inlined_call_operand.vmem [shape: f32[1,128], index: 4, kind: input, shape index: {}]
  %s5 = inlined_call_operand.vmem [shape: f32[1,8,128], index: 5, kind: output, shape index: {}]
  %s6 = sld [smem:[#allocation0]]
  $region69: #{self_attention.1} parent=0
    _
  %s8 = ssub.s32 1, %s6
  %s9 = scalar_select 0, %s8, %s6
  $region1: #{self_attention.1} parent=0
    #allocation2 [shape = 'u8[196608]{0}', space=vmem, size = 0x30000, scoped, tag = 'input window, operand 1']
    #allocation3 [shape = 's32[2]{0}', space=sflag, size = 0x8, scoped, tag = 'scoped memory for self_attention.1']
    #allocation4 [shape = 'u8[65536]{0}', space=vmem, size = 0x10000, scoped, tag = 'input window, operand 3']
    #allocation5 [shape = 's32[2]{0}', space=sflag, size = 0x8, scoped, tag = 'scoped memory for self_attention.1']
    %10 = vsyncpa [#allocation3], 0
    %s11 = scalar_lea.sflag [#allocation3], 1
    %12 = vsyncpa %s11, 0
    %13 = vsyncpa [#allocation5], 0
    %s14 = scalar_lea.sflag [#allocation5], 1
    %15 = vsyncpa %s14, 0
    loop: start=0, step=1, limit=4
    $region2: #{self_attention.1} parent=1 // loop_pre_header
      _
    $region3: #{self_attention.1} parent=1 // loop_header
      %s17 = sphi 0, %s21
      %p18 = scmp.ge.s32.totalorder %s17, 4
      %s24 = sphi 0, %s36
      %s25 = sphi 0, %s32
      %s26 = sphi 0, %s24
      %s27 = sphi 0, %s25
      %s28 = sphi 0, %s26
      %s29 = sphi 0, %s27
      %s39 = sphi 0, %s41
      %s42 = sphi 0, %s39
      %s43 = sphi 0, %s42
      %s59 = sphi 0, %s43
      %s65 = sphi 0, %s67
      %s68 = sphi 0, %s65
      %s69 = sphi 0, %s68
      %s85 = sphi 0, %s69
      %s91 = sphi 0, %s93
      %s94 = sphi 0, %s91
      %s95 = sphi 0, %s94
      %s111 = sphi 0, %s95
      %s117 = sphi 0, %s119
      %s120 = sphi 0, %s117
      %s121 = sphi 0, %s120
      %s137 = sphi 0, %s121
      %s141 = sphi 0, %s141
      %s143 = sphi 0, %s141
      %s144 = sphi 0, %s143
      %s158 = sphi 0, %s144
      %s164 = sphi 0, %s166
      %s167 = sphi 0, %s164
      %s168 = sphi 0, %s167
      %s184 = sphi 0, %s168
    $region4: #{self_attention.1} parent=1 // loop_header_branch
      %20 = sbr.rel (%p18) target = $region8
    $region5: #{self_attention.1} parent=1 // loop_body
      %s22 = ssub.s32 %s17, 1
      %s23 = ssub.s32 %s17, 2
      %s30 = sadd.s32 1, %s25
      %p31 = scmp.ge.s32.totalorder %s30, 2
      %s32 = scalar_select %p31, 0, %s30
      %s33 = sadd.s32 1, %s24
      %s34 = scalar_select %p31, %s33, %s24
      %p35 = scmp.ge.s32.totalorder %s34, 1
      %s36 = scalar_select %p35, 0, %s34
      %s37 = ssub.s32 %s24, %s36
      %p38 = scmp.eq.s32.totalorder %s37, 0
      %s40 = sadd.s32 %s39, 1
      %s41 = scalar_select %p38, %s39, %s40
      %p44 = pneg %p38
      %p45 = scmp.eq.s32.totalorder %s17, 1
      %p46 = por %p44, %p45
      %p47 = scmp.ne.s32.totalorder %s39, %s42
      %p48 = scmp.eq.s32.totalorder %s17, 0
      %p49 = por %p47, %p48
      %p50 = scmp.ne.s32.totalorder %s39, %s42
      %p51 = scmp.eq.s32.totalorder %s22, 1
      %p52 = por %p50, %p51
      %p53 = scmp.ne.s32.totalorder %s42, %s43
      %p54 = scmp.eq.s32.totalorder %s22, 0
      %p55 = por %p53, %p54
      %p56 = scmp.ne.s32.totalorder %s42, %s43
      %p57 = scmp.eq.s32.totalorder %s23, 1
      %p58 = por %p56, %p57
      %p60 = scmp.ne.s32.totalorder %s43, %s59
      %p61 = scmp.eq.s32.totalorder %s23, 0
      %p62 = por %p60, %p61
      %s63 = ssub.s32 %s25, %s32
      %p64 = scmp.eq.s32.totalorder %s63, 0
      %s66 = sadd.s32 %s65, 1
      %s67 = scalar_select %p64, %s65, %s66
      %p70 = pneg %p64
      %p71 = scmp.eq.s32.totalorder %s17, 1
      %p72 = por %p70, %p71
      %p73 = scmp.ne.s32.totalorder %s65, %s68
      %p74 = scmp.eq.s32.totalorder %s17, 0
      %p75 = por %p73, %p74
      %p76 = scmp.ne.s32.totalorder %s65, %s68
      %p77 = scmp.eq.s32.totalorder %s22, 1
      %p78 = por %p76, %p77
      %p79 = scmp.ne.s32.totalorder %s68, %s69
      %p80 = scmp.eq.s32.totalorder %s22, 0
      %p81 = por %p79, %p80
      %p82 = scmp.ne.s32.totalorder %s68, %s69
      %p83 = scmp.eq.s32.totalorder %s23, 1
      %p84 = por %p82, %p83
      %p86 = scmp.ne.s32.totalorder %s69, %s85
      %p87 = scmp.eq.s32.totalorder %s23, 0
      %p88 = por %p86, %p87
      %s89 = ssub.s32 %s25, %s32
      %p90 = scmp.eq.s32.totalorder %s89, 0
      %s92 = sadd.s32 %s91, 1
      %s93 = scalar_select %p90, %s91, %s92
      %p96 = pneg %p90
      %p97 = scmp.eq.s32.totalorder %s17, 1
      %p98 = por %p96, %p97
      %p99 = scmp.ne.s32.totalorder %s91, %s94
      %p100 = scmp.eq.s32.totalorder %s17, 0
      %p101 = por %p99, %p100
      %p102 = scmp.ne.s32.totalorder %s91, %s94
      %p103 = scmp.eq.s32.totalorder %s22, 1
      %p104 = por %p102, %p103
      %p105 = scmp.ne.s32.totalorder %s94, %s95
      %p106 = scmp.eq.s32.totalorder %s22, 0
      %p107 = por %p105, %p106
      %p108 = scmp.ne.s32.totalorder %s94, %s95
      %p109 = scmp.eq.s32.totalorder %s23, 1
      %p110 = por %p108, %p109
      %p112 = scmp.ne.s32.totalorder %s95, %s111
      %p113 = scmp.eq.s32.totalorder %s23, 0
      %p114 = por %p112, %p113
      %s115 = ssub.s32 %s25, %s32
      %p116 = scmp.eq.s32.totalorder %s115, 0
      %s118 = sadd.s32 %s117, 1
      %s119 = scalar_select %p116, %s117, %s118
      %p122 = pneg %p116
      %p123 = scmp.eq.s32.totalorder %s17, 1
      %p124 = por %p122, %p123
      %p125 = scmp.ne.s32.totalorder %s117, %s120
      %p126 = scmp.eq.s32.totalorder %s17, 0
      %p127 = por %p125, %p126
      %p128 = scmp.ne.s32.totalorder %s117, %s120
      %p129 = scmp.eq.s32.totalorder %s22, 1
      %p130 = por %p128, %p129
      %p131 = scmp.ne.s32.totalorder %s120, %s121
      %p132 = scmp.eq.s32.totalorder %s22, 0
      %p133 = por %p131, %p132
      %p134 = scmp.ne.s32.totalorder %s120, %s121
      %p135 = scmp.eq.s32.totalorder %s23, 1
      %p136 = por %p134, %p135
      %p138 = scmp.ne.s32.totalorder %s121, %s137
      %p139 = scmp.eq.s32.totalorder %s23, 0
      %p140 = por %p138, %p139
      %s142 = sadd.s32 %s141, 1
      %p145 = scmp.eq.s32.totalorder %s17, 1
      %p146 = scmp.ne.s32.totalorder %s141, %s143
      %p147 = scmp.eq.s32.totalorder %s17, 0
      %p148 = por %p146, %p147
      %p149 = scmp.ne.s32.totalorder %s141, %s143
      %p150 = scmp.eq.s32.totalorder %s22, 1
      %p151 = por %p149, %p150
      %p152 = scmp.ne.s32.totalorder %s143, %s144
      %p153 = scmp.eq.s32.totalorder %s22, 0
      %p154 = por %p152, %p153
      %p155 = scmp.ne.s32.totalorder %s143, %s144
      %p156 = scmp.eq.s32.totalorder %s23, 1
      %p157 = por %p155, %p156
      %p159 = scmp.ne.s32.totalorder %s144, %s158
      %p160 = scmp.eq.s32.totalorder %s23, 0
      %p161 = por %p159, %p160
      %s162 = ssub.s32 %s24, %s36
      %p163 = scmp.eq.s32.totalorder %s162, 0
      %s165 = sadd.s32 %s164, 1
      %s166 = scalar_select %p163, %s164, %s165
      %p169 = pneg %p163
      %p170 = scmp.eq.s32.totalorder %s17, 1
      %p171 = por %p169, %p170
      %p172 = scmp.ne.s32.totalorder %s164, %s167
      %p173 = scmp.eq.s32.totalorder %s17, 0
      %p174 = por %p172, %p173
      %p175 = scmp.ne.s32.totalorder %s164, %s167
      %p176 = scmp.eq.s32.totalorder %s22, 1
      %p177 = por %p175, %p176
      %p178 = scmp.ne.s32.totalorder %s167, %s168
      %p179 = scmp.eq.s32.totalorder %s22, 0
      %p180 = por %p178, %p179
      %p181 = scmp.ne.s32.totalorder %s167, %s168
      %p182 = scmp.eq.s32.totalorder %s23, 1
      %p183 = por %p181, %p182
      %p185 = scmp.ne.s32.totalorder %s168, %s184
      %p186 = scmp.eq.s32.totalorder %s23, 0
      %p187 = por %p185, %p186
      %p188 = scmp.le.s32.totalorder 1, %s17
      %p189 = scmp.lt.s32.totalorder %s17, 3
      %p190 = pnand %p188, %p189
      %p191 = pneg %p190
      // Predicated region
      $region9: #{self_attention.1} parent=5 // pred_check
        _
      $region10: #{self_attention.1} parent=5 // pred_check_branch
        %193 = sbr.rel (%p190) target = $region12
      $region11: #{self_attention.1} parent=5 // pred_region
        %s194 = ssub.s32 %s17, 1
        // Predicated region
        $region13: #{self_attention.1} parent=11 // pred_check
          %p195 = pneg %p55
        $region14: #{self_attention.1} parent=11 // pred_check_branch
          %197 = sbr.rel (%p195) target = $region16
        $region15: #{self_attention.1} parent=11 // pred_region
          %p198 = scmp.lt.s32.totalorder %s26, 0
          %s199 = scalar_select %p198, %s26, 0
          %s200 = smul.addr %s199, 4
          %s201 = scalar_lea.vmem %s0, %s200
        $region16: #{self_attention.1} parent=11 // pred_fallthru
          _
        // Predicated region
        $region17: #{self_attention.1} parent=11 // pred_check
          %p202 = pneg %p154
        $region18: #{self_attention.1} parent=11 // pred_check_branch
          %204 = sbr.rel (%p202) target = $region20
        $region19: #{self_attention.1} parent=11 // pred_region
          _
        $region20: #{self_attention.1} parent=11 // pred_fallthru
          _
      $region12: #{self_attention.1} parent=5 // pred_fallthru
        _
      %p205 = scmp.lt.s32.totalorder %s17, 2
      // Predicated region
      $region21: #{self_attention.1} parent=5 // pred_check
        %p206 = pneg %p205
      $region22: #{self_attention.1} parent=5 // pred_check_branch
        %208 = sbr.rel (%p206) target = $region24
      $region23: #{self_attention.1} parent=5 // pred_region
        // Predicated region
        $region25: #{self_attention.1} parent=23 // pred_check
          %p209 = pneg %p75
        $region26: #{self_attention.1} parent=23 // pred_check_branch
          %211 = sbr.rel (%p209) target = $region28
        $region27: #{self_attention.1} parent=23 // pred_region
          %s212 = sand.u32 %s65, 1
          %s213 = scalar_lea.sflag [#allocation3], %s212
          %s214 = sand.u32 %s65, 1
          %s215 = smul.addr %s214, 192
          %s216 = scalar_lea.vmem [#allocation2], %s215
          %s218 = ssub.s32 3072, 3072
          %219 = vsyncadd %s213, %s218
          %s220 = smul.addr %s25, 48
          %s221 = smul.addr %s220, 64
          %s222 = scalar_lea.hbm %s1, %s221
          %s223 = sshll.u32 %s216, 4
          %s224 = int_to_ptr.vmem [resolvable:$true] %s223
          %229 = dma.hbm_to_vmem [thread:$0]  %s222, 3072, %s224, %s213, 192, 192, 12
        $region28: #{self_attention.1} parent=23 // pred_fallthru
          _
        // Predicated region
        $region29: #{self_attention.1} parent=23 // pred_check
          %p230 = pneg %p101
        $region30: #{self_attention.1} parent=23 // pred_check_branch
          %232 = sbr.rel (%p230) target = $region32
        $region31: #{self_attention.1} parent=23 // pred_region
          %p233 = scmp.lt.s32.totalorder %s25, 1
          %s234 = scalar_select %p233, %s25, 1
          %s235 = smul.addr %s234, 3
          %s236 = scalar_lea.vmem %s2, %s235
        $region32: #{self_attention.1} parent=23 // pred_fallthru
          _
        // Predicated region
        $region33: #{self_attention.1} parent=23 // pred_check
          %p237 = pneg %p127
        $region34: #{self_attention.1} parent=23 // pred_check_branch
          %239 = sbr.rel (%p237) target = $region36
        $region35: #{self_attention.1} parent=23 // pred_region
          %s240 = sand.u32 %s117, 1
          %s241 = scalar_lea.sflag [#allocation5], %s240
          %s242 = sand.u32 %s117, 1
          %s243 = smul.addr %s242, 64
          %s244 = scalar_lea.vmem [#allocation4], %s243
          %s246 = ssub.s32 1024, 1024
          %247 = vsyncadd %s241, %s246
          %s248 = smul.addr %s25, 16
          %s249 = smul.addr %s248, 64
          %s250 = scalar_lea.hbm %s3, %s249
          %s251 = sshll.u32 %s244, 4
          %s252 = int_to_ptr.vmem [resolvable:$true] %s251
          %257 = dma.hbm_to_vmem [thread:$0]  %s250, 1024, %s252, %s241, 64, 64, 4
        $region36: #{self_attention.1} parent=23 // pred_fallthru
          _
      $region24: #{self_attention.1} parent=5 // pred_fallthru
        _
      %p258 = scmp.le.s32.totalorder 1, %s17
      %p259 = scmp.lt.s32.totalorder %s17, 3
      %p260 = pnand %p258, %p259
      %p261 = pneg %p260
      // Predicated region
      $region37: #{self_attention.1} parent=5 // pred_check
        _
      $region38: #{self_attention.1} parent=5 // pred_check_branch
        %263 = sbr.rel (%p260) target = $region40
      $region39: #{self_attention.1} parent=5 // pred_region
        %s264 = ssub.s32 %s17, 1
        %s265 = sand.u32 %s68, 1
        %s266 = scalar_lea.sflag [#allocation3], %s265
        %s267 = sand.u32 %s68, 1
        %s268 = smul.addr %s267, 192
        %s269 = scalar_lea.vmem [#allocation2], %s268
        // Predicated region
        $region41: #{self_attention.1} parent=39 // pred_check
          %p270 = pneg %p81
        $region42: #{self_attention.1} parent=39 // pred_check_branch
          %272 = sbr.rel (%p270) target = $region44
        $region43: #{self_attention.1} parent=39 // pred_region
          %273 = dma.done %s266, 3072
        $region44: #{self_attention.1} parent=39 // pred_fallthru
          _
        %s274 = sand.u32 %s120, 1
        %s275 = scalar_lea.sflag [#allocation5], %s274
        %s276 = sand.u32 %s120, 1
        %s277 = smul.addr %s276, 64
        %s278 = scalar_lea.vmem [#allocation4], %s277
        // Predicated region
        $region45: #{self_attention.1} parent=39 // pred_check
          %p279 = pneg %p133
        $region46: #{self_attention.1} parent=39 // pred_check_branch
          %281 = sbr.rel (%p279) target = $region48
        $region47: #{self_attention.1} parent=39 // pred_region
          %282 = dma.done %s275, 1024
        $region48: #{self_attention.1} parent=39 // pred_fallthru
          _
        %p283 = scmp.lt.s32.totalorder %s26, 0
        %s284 = scalar_select %p283, %s26, 0
        %s285 = smul.addr %s284, 4
        %s286 = scalar_lea.vmem %s0, %s285
        %p287 = pneg %p55
        %p288 = pneg %p52
        %s289 = sand.u32 %s68, 1
        %s290 = scalar_lea.sflag [#allocation3], %s289
        %s291 = sand.u32 %s68, 1
        %s292 = smul.addr %s291, 192
        %s293 = scalar_lea.vmem [#allocation2], %s292
        %p294 = pneg %p81
        %p295 = pneg %p78
        %p296 = scmp.lt.s32.totalorder %s27, 1
        %s297 = scalar_select %p296, %s27, 1
        %s298 = smul.addr %s297, 3
        %s299 = scalar_lea.vmem %s2, %s298
        %p300 = pneg %p107
        %p301 = pneg %p104
        %s302 = sand.u32 %s120, 1
        %s303 = scalar_lea.sflag [#allocation5], %s302
        %s304 = sand.u32 %s120, 1
        %s305 = smul.addr %s304, 64
        %s306 = scalar_lea.vmem [#allocation4], %s305
        %p307 = pneg %p133
        %p308 = pneg %p130
        %p309 = pneg %p154
        %p310 = pneg %p151
        %p311 = pneg %p180
        %p312 = pneg %p177
        %p313 = scmp.lt.s32.totalorder %s26, 0
        %s314 = scalar_select %p313, %s26, 0
        %s315 = smul.addr %s314, 8
        %s316 = scalar_lea.vmem %s5, %s315
        %p317 = scmp.lt.s32.totalorder %s26, 0
        %s318 = scalar_select %p317, %s26, 0
        %s319 = smul.addr %s318, 4
        %s320 = scalar_lea.vmem %s0, %s319
        %p321 = scmp.lt.s32.totalorder %s27, 1
        %s322 = scalar_select %p321, %s27, 1
        %s323 = smul.addr %s322, 3
        %s324 = scalar_lea.vmem %s2, %s323
        %p325 = scmp.lt.s32.totalorder %s26, 0
        %s326 = scalar_select %p325, %s26, 0
        %s327 = smul.addr %s326, 8
        %s328 = scalar_lea.vmem %s5, %s327
        %v330 = vld [vmem:[%s320] sm:$0xf]
        %v331 = vld [vmem:[%s269] sm:$0xff]
        %v332 = vld [vmem:[%s269 + $0x8] sm:$0xf]
        %v333 = vld [vmem:[%s269 + $0xc] sm:$0xff]
        %v334 = vld [vmem:[%s269 + $0x14] sm:$0xf]
        %v335 = vld [vmem:[%s269 + $0x18] sm:$0xff]
        %v336 = vld [vmem:[%s269 + $0x20] sm:$0xf]
        %v337 = vld [vmem:[%s269 + $0x24] sm:$0xff]
        %v338 = vld [vmem:[%s269 + $0x2c] sm:$0xf]
        %v339 = vld [vmem:[%s269 + $0x30] sm:$0xff]
        %v340 = vld [vmem:[%s269 + $0x38] sm:$0xf]
        %v341 = vld [vmem:[%s269 + $0x3c] sm:$0xff]
        %v342 = vld [vmem:[%s269 + $0x44] sm:$0xf]
        %v343 = vld [vmem:[%s269 + $0x48] sm:$0xff]
        %v344 = vld [vmem:[%s269 + $0x50] sm:$0xf]
        %v345 = vld [vmem:[%s269 + $0x54] sm:$0xff]
        %v346 = vld [vmem:[%s269 + $0x5c] sm:$0xf]
        %v347 = vld [vmem:[%s269 + $0x60] sm:$0xff]
        %v348 = vld [vmem:[%s269 + $0x68] sm:$0xf]
        %v349 = vld [vmem:[%s269 + $0x6c] sm:$0xff]
        %v350 = vld [vmem:[%s269 + $0x74] sm:$0xf]
        %v351 = vld [vmem:[%s269 + $0x78] sm:$0xff]
        %v352 = vld [vmem:[%s269 + $0x80] sm:$0xf]
        %v353 = vld [vmem:[%s269 + $0x84] sm:$0xff]
        %v354 = vld [vmem:[%s269 + $0x8c] sm:$0xf]
        %v355 = vld [vmem:[%s269 + $0x90] sm:$0xff]
        %v356 = vld [vmem:[%s269 + $0x98] sm:$0xf]
        %v357 = vld [vmem:[%s269 + $0x9c] sm:$0xff]
        %v358 = vld [vmem:[%s269 + $0xa4] sm:$0xf]
        %v359 = vld [vmem:[%s269 + $0xa8] sm:$0xff]
        %v360 = vld [vmem:[%s269 + $0xb0] sm:$0xf]
        %v361 = vld [vmem:[%s269 + $0xb4] sm:$0xff]
        %v362 = vld [vmem:[%s269 + $0xbc] sm:$0xf]
        %v363 = vld [vmem:[%s324] sm:$0x7]
        %v365 = vlaneseq
        %v366 = vshrl.u32 %v365, 7
        %v367 = vsub.s32 0, %v366
        %v368 = vrot.slane %v363, %v367
        %v369 = vlaneseq
        %v370 = vshrl.u32 %v369, 7
        %v371 = vsub.s32 1, %v370
        %v372 = vrot.slane %v363, %v371
        %v373 = vlaneseq
        %v374 = vshrl.u32 %v373, 7
        %v375 = vsub.s32 2, %v374
        %v376 = vrot.slane %v363, %v375
        %v412 = vunpack.c.l.b16 %v331
        %v413 = vunpack.c.h.b16 %v331
        %v414 = vunpack.c.l.b16 %v332
        %v415 = vunpack.c.l.b16 %v333
        %v416 = vunpack.c.h.b16 %v333
        %v417 = vunpack.c.l.b16 %v334
        %v418 = vunpack.c.l.b16 %v335
        %v419 = vunpack.c.h.b16 %v335
        %v420 = vunpack.c.l.b16 %v336
        %v421 = vunpack.c.l.b16 %v337
        %v422 = vunpack.c.h.b16 %v337
        %v423 = vunpack.c.l.b16 %v338
        %v424 = vunpack.c.l.b16 %v339
        %v425 = vunpack.c.h.b16 %v339
        %v426 = vunpack.c.l.b16 %v340
        %v427 = vunpack.c.l.b16 %v341
        %v428 = vunpack.c.h.b16 %v341
        %v429 = vunpack.c.l.b16 %v342
        %v430 = vunpack.c.l.b16 %v343
        %v431 = vunpack.c.h.b16 %v343
        %v432 = vunpack.c.l.b16 %v344
        %v433 = vunpack.c.l.b16 %v345
        %v434 = vunpack.c.h.b16 %v345
        %v435 = vunpack.c.l.b16 %v346
        %v436 = vunpack.c.l.b16 %v347
        %v437 = vunpack.c.h.b16 %v347
        %v438 = vunpack.c.l.b16 %v348
        %v439 = vunpack.c.l.b16 %v349
        %v440 = vunpack.c.h.b16 %v349
        %v441 = vunpack.c.l.b16 %v350
        %v442 = vunpack.c.l.b16 %v351
        %v443 = vunpack.c.h.b16 %v351
        %v444 = vunpack.c.l.b16 %v352
        %v445 = vunpack.c.l.b16 %v353
        %v446 = vunpack.c.h.b16 %v353
        %v447 = vunpack.c.l.b16 %v354
        %v448 = vunpack.c.l.b16 %v355
        %v449 = vunpack.c.h.b16 %v355
        %v450 = vunpack.c.l.b16 %v356
        %v451 = vunpack.c.l.b16 %v357
        %v452 = vunpack.c.h.b16 %v357
        %v453 = vunpack.c.l.b16 %v358
        %v454 = vunpack.c.l.b16 %v359
        %v455 = vunpack.c.h.b16 %v359
        %v456 = vunpack.c.l.b16 %v360
        %v457 = vunpack.c.l.b16 %v361
        %v458 = vunpack.c.h.b16 %v361
        %v459 = vunpack.c.l.b16 %v362
        %v460 = vpack.c.b16 %v415, %v412
        %v461 = vpack.c.b16 %v416, %v413
        %v462 = vpack.c.b16 %v417, %v414
        %v463 = vpack.c.b16 %v421, %v418
        %v464 = vpack.c.b16 %v422, %v419
        %v465 = vpack.c.b16 %v423, %v420
        %v466 = vpack.c.b16 %v427, %v424
        %v467 = vpack.c.b16 %v428, %v425
        %v468 = vpack.c.b16 %v429, %v426
        %v469 = vpack.c.b16 %v433, %v430
        %v470 = vpack.c.b16 %v434, %v431
        %v471 = vpack.c.b16 %v435, %v432
        %v472 = vpack.c.b16 %v439, %v436
        %v473 = vpack.c.b16 %v440, %v437
        %v474 = vpack.c.b16 %v441, %v438
        %v475 = vpack.c.b16 %v445, %v442
        %v476 = vpack.c.b16 %v446, %v443
        %v477 = vpack.c.b16 %v447, %v444
        %v478 = vpack.c.b16 %v451, %v448
        %v479 = vpack.c.b16 %v452, %v449
        %v480 = vpack.c.b16 %v453, %v450
        %v481 = vpack.c.b16 %v457, %v454
        %v482 = vpack.c.b16 %v458, %v455
        %v483 = vpack.c.b16 %v459, %v456
        %508 = vmatprep.subr.bf16.mxu0 %v482
        %509 = vmatpush1.bf16.msra.mxu0 %v481
        %510 = vmatprep.subr.bf16.mxu0 %v479
        %511 = vmatpush1.bf16.msra.mxu0 %v478
        %512 = vmatprep.subr.bf16.mxu0 %v476
        %513 = vmatpush1.bf16.msra.mxu0 %v475
        %514 = vmatprep.subr.bf16.mxu0 %v473
        %515 = vmatpush1.bf16.msra.mxu0 %v472
        %516 = vmatprep.subr.bf16.mxu0 %v470
        %517 = vmatpush1.bf16.msra.mxu0 %v469
        %518 = vmatprep.subr.bf16.mxu0 %v467
        %519 = vmatpush1.bf16.msra.mxu0 %v466
        %520 = vmatprep.subr.bf16.mxu0 %v464
        %521 = vmatpush1.bf16.msra.mxu0 %v463
        %522 = vmatprep.subr.bf16.mxu0 %v461
        %523 = vmatpush1.bf16.msra.mxu0 %v460
        %524 = vmatprep.subr.bf16.mxu0 0
        %525 = vmatpush2.bf16.msra.mxu0 0
        %526 = vmatprep.subr.bf16.mxu0 0
        %527 = vmatpush2.bf16.msra.mxu0 0
        %528 = vmatprep.subr.bf16.mxu0 0
        %529 = vmatpush2.bf16.msra.mxu0 0
        %530 = vmatprep.subr.bf16.mxu0 0
        %531 = vmatpush2.bf16.msra.mxu0 0
        %532 = vmatprep.subr.bf16.mxu0 0
        %533 = vmatpush2.bf16.msra.mxu0 0
        %534 = vmatprep.subr.bf16.mxu0 0
        %535 = vmatpush2.bf16.msra.mxu0 0
        %536 = vmatprep.subr.bf16.mxu0 0
        %537 = vmatpush2.bf16.msra.mxu0 0
        %538 = vmatprep.subr.bf16.mxu0 0
        %539 = vmatpush2.bf16.msra.mxu0 0
        %540 = vmatprep.mubr.bf16.mxu0 0
        %541 = vmatmul.mubr.bf16.gmra.mxu0 %v330
        %v542 = vpop.f32.mrf.mxu0
        %v543 = vadd.f32 %v368, %v542
        %v544 = vpop.f32.mrf.mxu0
        %v545 = vadd.f32 %v372, %v544
        %v546 = vpop.f32.mrf.mxu0
        %v547 = vpop.f32.mrf.mxu0
        %548 = vdwg.mxu0
        %549 = vmatprep.subr.bf16.mxu0 0
        %550 = vmatpush1.bf16.msra.mxu0 %v483
        %551 = vmatprep.subr.bf16.mxu0 0
        %552 = vmatpush1.bf16.msra.mxu0 %v480
        %553 = vmatprep.subr.bf16.mxu0 0
        %554 = vmatpush1.bf16.msra.mxu0 %v477
        %555 = vmatprep.subr.bf16.mxu0 0
        %556 = vmatpush1.bf16.msra.mxu0 %v474
        %557 = vmatprep.subr.bf16.mxu0 0
        %558 = vmatpush1.bf16.msra.mxu0 %v471
        %559 = vmatprep.subr.bf16.mxu0 0
        %560 = vmatpush1.bf16.msra.mxu0 %v468
        %561 = vmatprep.subr.bf16.mxu0 0
        %562 = vmatpush1.bf16.msra.mxu0 %v465
        %563 = vmatprep.subr.bf16.mxu0 0
        %564 = vmatpush1.bf16.msra.mxu0 %v462
        %565 = vmatprep.subr.bf16.mxu0 0
        %566 = vmatpush2.bf16.msra.mxu0 0
        %567 = vmatprep.subr.bf16.mxu0 0
        %568 = vmatpush2.bf16.msra.mxu0 0
        %569 = vmatprep.subr.bf16.mxu0 0
        %570 = vmatpush2.bf16.msra.mxu0 0
        %571 = vmatprep.subr.bf16.mxu0 0
        %572 = vmatpush2.bf16.msra.mxu0 0
        %573 = vmatprep.subr.bf16.mxu0 0
        %574 = vmatpush2.bf16.msra.mxu0 0
        %575 = vmatprep.subr.bf16.mxu0 0
        %576 = vmatpush2.bf16.msra.mxu0 0
        %577 = vmatprep.subr.bf16.mxu0 0
        %578 = vmatpush2.bf16.msra.mxu0 0
        %579 = vmatprep.subr.bf16.mxu0 0
        %580 = vmatpush2.bf16.msra.mxu0 0
        %581 = vmatprep.mubr.bf16.mxu0 0
        %582 = vmatmul.mubr.bf16.gmra.mxu0 %v330
        %v583 = vpop.f32.mrf.mxu0
        %v584 = vadd.f32 %v376, %v583
        %v585 = vpop.f32.mrf.mxu0
        %v586 = vpop.f32.mrf.mxu0
        %v587 = vpop.f32.mrf.mxu0
        %588 = vdwg.mxu0
        %v589 = vpack.c.bf16 %v543, %v543
        %v590 = vpack.c.bf16 %v545, %v545
        %591 = vmatprep.subr.bf16.mxu0 0
        %592 = vmatpush1.bf16.xpose.msra.mxu0 0
        %593 = vmatprep.subr.bf16.mxu0 0
        %594 = vmatpush1.bf16.xpose.msra.mxu0 0
        %595 = vmatprep.subr.bf16.mxu0 0
        %596 = vmatpush1.bf16.xpose.msra.mxu0 0
        %597 = vmatprep.subr.bf16.mxu0 0
        %598 = vmatpush1.bf16.xpose.msra.mxu0 0
        %599 = vmatprep.subr.bf16.mxu0 0
        %600 = vmatpush1.bf16.xpose.msra.mxu0 0
        %601 = vmatprep.subr.bf16.mxu0 0
        %602 = vmatpush1.bf16.xpose.msra.mxu0 0
        %603 = vmatprep.subr.bf16.mxu0 0
        %604 = vmatpush1.bf16.xpose.msra.mxu0 0
        %605 = vmatprep.subr.bf16.mxu0 0
        %606 = vmatpush1.bf16.xpose.msra.mxu0 %v590
        %607 = vmatprep.subr.bf16.mxu0 0
        %608 = vmatpush2.bf16.xpose.msra.mxu0 0
        %609 = vmatprep.subr.bf16.mxu0 0
        %610 = vmatpush2.bf16.xpose.msra.mxu0 0
        %611 = vmatprep.subr.bf16.mxu0 0
        %612 = vmatpush2.bf16.xpose.msra.mxu0 0
        %613 = vmatprep.subr.bf16.mxu0 0
        %614 = vmatpush2.bf16.xpose.msra.mxu0 0
        %615 = vmatprep.subr.bf16.mxu0 0
        %616 = vmatpush2.bf16.xpose.msra.mxu0 0
        %617 = vmatprep.subr.bf16.mxu0 0
        %618 = vmatpush2.bf16.xpose.msra.mxu0 0
        %619 = vmatprep.subr.bf16.mxu0 0
        %620 = vmatpush2.bf16.xpose.msra.mxu0 0
        %621 = vmatprep.subr.bf16.mxu0 0
        %622 = vmatpush2.bf16.xpose.msra.mxu0 0
        %623 = vmatprep.mubr.bf16.mxu0 0
        %624 = vmatmul.mubr.bf16.gmra.mxu0 %v589
        %v625 = vpop.f32.mrf.mxu0
        %v626 = vadd.f32 0.0, %v625
        %v627 = vpop.f32.mrf.mxu0
        %v628 = vpop.f32.mrf.mxu0
        %v629 = vpop.f32.mrf.mxu0
        %630 = vdwg.mxu0
        %v631 = vlaneseq
        %v632 = vand.u32 %v631, 127
        %vm633 = vcmp.lt.s32.totalorder %v632, 4
        %v634 = vsel %vm633, %v626, -1e+30
        %vm635 = vcmask 64512
        %v636 = vsel %vm635, %v634, -inf
        %637 = vmax.xlane.f32.xlu0 %v636
        %v638 = vpop.xlane.xlu0 %637
        %v639 = vsub.f32 %v634, %v638
        %v640 = vmul.f32 %v639, 1.442695
        %v641 = vpow.pop %v640
        %v642 = vsel %vm635, %v641, 0.0
        %643 = vadd.xlane.f32.xlu0 %v642
        %v644 = vpop.xlane.xlu0 %643
        %v645 = vrcp.pop %v644
        %v646 = vmul.f32 %v641, %v645
        %v647 = vpack.c.bf16 %v646, %v646
        %v648 = vpack.c.bf16 %v584, %v584
        %v650 = vsel %vm635, %v647, 0
        %vm652 = vcmask 1043456
        %v654 = vsel %vm652, %v648, 0
        %656 = vmatprep.subr.bf16.mxu0 0
        %657 = vmatpush1.bf16.msra.mxu0 0
        %658 = vmatprep.subr.bf16.mxu0 0
        %659 = vmatpush1.bf16.msra.mxu0 0
        %660 = vmatprep.subr.bf16.mxu0 0
        %661 = vmatpush1.bf16.msra.mxu0 0
        %662 = vmatprep.subr.bf16.mxu0 0
        %663 = vmatpush1.bf16.msra.mxu0 0
        %664 = vmatprep.subr.bf16.mxu0 0
        %665 = vmatpush1.bf16.msra.mxu0 0
        %666 = vmatprep.subr.bf16.mxu0 0
        %667 = vmatpush1.bf16.msra.mxu0 0
        %668 = vmatprep.subr.bf16.mxu0 0
        %669 = vmatpush1.bf16.msra.mxu0 0
        %670 = vmatprep.subr.bf16.mxu0 0
        %671 = vmatpush1.bf16.msra.mxu0 %v654
        %672 = vmatprep.subr.bf16.mxu0 0
        %673 = vmatpush2.bf16.msra.mxu0 0
        %674 = vmatprep.subr.bf16.mxu0 0
        %675 = vmatpush2.bf16.msra.mxu0 0
        %676 = vmatprep.subr.bf16.mxu0 0
        %677 = vmatpush2.bf16.msra.mxu0 0
        %678 = vmatprep.subr.bf16.mxu0 0
        %679 = vmatpush2.bf16.msra.mxu0 0
        %680 = vmatprep.subr.bf16.mxu0 0
        %681 = vmatpush2.bf16.msra.mxu0 0
        %682 = vmatprep.subr.bf16.mxu0 0
        %683 = vmatpush2.bf16.msra.mxu0 0
        %684 = vmatprep.subr.bf16.mxu0 0
        %685 = vmatpush2.bf16.msra.mxu0 0
        %686 = vmatprep.subr.bf16.mxu0 0
        %687 = vmatpush2.bf16.msra.mxu0 0
        %688 = vmatprep.mubr.bf16.mxu0 0
        %689 = vmatmul.mubr.bf16.gmra.mxu0 %v650
        %v690 = vpop.f32.mrf.mxu0
        %v691 = vadd.f32 0.0, %v690
        %v692 = vpop.f32.mrf.mxu0
        %v693 = vpop.f32.mrf.mxu0
        %v694 = vpop.f32.mrf.mxu0
        %695 = vdwg.mxu0
        %v696 = vpack.c.bf16 %v691, %v691
        %v697 = vld [vmem:[%s278] sm:$0xf]
        %v698 = vld [vmem:[%s278 + $0x4] sm:$0xf]
        %v699 = vld [vmem:[%s278 + $0x8] sm:$0xf]
        %v700 = vld [vmem:[%s278 + $0xc] sm:$0xf]
        %v701 = vld [vmem:[%s278 + $0x10] sm:$0xf]
        %v702 = vld [vmem:[%s278 + $0x14] sm:$0xf]
        %v703 = vld [vmem:[%s278 + $0x18] sm:$0xf]
        %v704 = vld [vmem:[%s278 + $0x1c] sm:$0xf]
        %v705 = vld [vmem:[%s278 + $0x20] sm:$0xf]
        %v706 = vld [vmem:[%s278 + $0x24] sm:$0xf]
        %v707 = vld [vmem:[%s278 + $0x28] sm:$0xf]
        %v708 = vld [vmem:[%s278 + $0x2c] sm:$0xf]
        %v709 = vld [vmem:[%s278 + $0x30] sm:$0xf]
        %v710 = vld [vmem:[%s278 + $0x34] sm:$0xf]
        %v711 = vld [vmem:[%s278 + $0x38] sm:$0xf]
        %v712 = vld [vmem:[%s278 + $0x3c] sm:$0xf]
        %v729 = vunpack.c.l.b16 %v697
        %v730 = vunpack.c.l.b16 %v698
        %v731 = vunpack.c.l.b16 %v699
        %v732 = vunpack.c.l.b16 %v700
        %v733 = vunpack.c.l.b16 %v701
        %v734 = vunpack.c.l.b16 %v702
        %v735 = vunpack.c.l.b16 %v703
        %v736 = vunpack.c.l.b16 %v704
        %v737 = vunpack.c.l.b16 %v705
        %v738 = vunpack.c.l.b16 %v706
        %v739 = vunpack.c.l.b16 %v707
        %v740 = vunpack.c.l.b16 %v708
        %v741 = vunpack.c.l.b16 %v709
        %v742 = vunpack.c.l.b16 %v710
        %v743 = vunpack.c.l.b16 %v711
        %v744 = vunpack.c.l.b16 %v712
        %v745 = vpack.c.b16 %v730, %v729
        %v746 = vpack.c.b16 %v732, %v731
        %v747 = vpack.c.b16 %v734, %v733
        %v748 = vpack.c.b16 %v736, %v735
        %v749 = vpack.c.b16 %v738, %v737
        %v750 = vpack.c.b16 %v740, %v739
        %v751 = vpack.c.b16 %v742, %v741
        %v752 = vpack.c.b16 %v744, %v743
        %761 = vmatprep.subr.bf16.mxu0 0
        %762 = vmatpush1.bf16.msra.mxu0 %v752
        %763 = vmatprep.subr.bf16.mxu0 0
        %764 = vmatpush1.bf16.msra.mxu0 %v751
        %765 = vmatprep.subr.bf16.mxu0 0
        %766 = vmatpush1.bf16.msra.mxu0 %v750
        %767 = vmatprep.subr.bf16.mxu0 0
        %768 = vmatpush1.bf16.msra.mxu0 %v749
        %769 = vmatprep.subr.bf16.mxu0 0
        %770 = vmatpush1.bf16.msra.mxu0 %v748
        %771 = vmatprep.subr.bf16.mxu0 0
        %772 = vmatpush1.bf16.msra.mxu0 %v747
        %773 = vmatprep.subr.bf16.mxu0 0
        %774 = vmatpush1.bf16.msra.mxu0 %v746
        %775 = vmatprep.subr.bf16.mxu0 0
        %776 = vmatpush1.bf16.msra.mxu0 %v745
        %777 = vmatprep.subr.bf16.mxu0 0
        %778 = vmatpush2.bf16.msra.mxu0 0
        %779 = vmatprep.subr.bf16.mxu0 0
        %780 = vmatpush2.bf16.msra.mxu0 0
        %781 = vmatprep.subr.bf16.mxu0 0
        %782 = vmatpush2.bf16.msra.mxu0 0
        %783 = vmatprep.subr.bf16.mxu0 0
        %784 = vmatpush2.bf16.msra.mxu0 0
        %785 = vmatprep.subr.bf16.mxu0 0
        %786 = vmatpush2.bf16.msra.mxu0 0
        %787 = vmatprep.subr.bf16.mxu0 0
        %788 = vmatpush2.bf16.msra.mxu0 0
        %789 = vmatprep.subr.bf16.mxu0 0
        %790 = vmatpush2.bf16.msra.mxu0 0
        %791 = vmatprep.subr.bf16.mxu0 0
        %792 = vmatpush2.bf16.msra.mxu0 0
        %793 = vmatprep.mubr.bf16.mxu0 0
        %794 = vmatmul.mubr.bf16.gmra.mxu0 %v696
        %v795 = vpop.f32.mrf.mxu0
        %v796 = vadd.f32 0.0, %v795
        %v797 = vpop.f32.mrf.mxu0
        %v798 = vpop.f32.mrf.mxu0
        %v799 = vpop.f32.mrf.mxu0
        %800 = vdwg.mxu0
        %p801 = scmp.eq.s32.totalorder %s27, 0
        // Predicated region
        $region49: #{self_attention.1} parent=39 // pred_check
          %p802 = pneg %p801
        $region50: #{self_attention.1} parent=39 // pred_check_branch
          %804 = sbr.rel (%p802) target = $region52
        $region51: #{self_attention.1} parent=39 // pred_region
          %v805 = vld [vmem:[%s4] sm:$0x1]
          %v807 = vlaneseq
          %v808 = vshrl.u32 %v807, 7
          %v809 = vsub.s32 0, %v808
          %v810 = vrot.slane %v805, %v809
          %v812 = vadd.f32 %v796, %v810
          %813 = vst [vmem:[%s328] sm:$0xff] %v812
        $region52: #{self_attention.1} parent=39 // pred_fallthru
          _
        %p814 = scmp.ne.s32.totalorder %s27, 0
        // Predicated region
        $region53: #{self_attention.1} parent=39 // pred_check
          %p815 = pneg %p814
        $region54: #{self_attention.1} parent=39 // pred_check_branch
          %817 = sbr.rel (%p815) target = $region56
        $region55: #{self_attention.1} parent=39 // pred_region
          %v818 = vld [vmem:[%s328] sm:$0xff]
          %v819 = vadd.f32 %v818, %v796
          %820 = vst [vmem:[%s328] sm:$0xff] %v819
        $region56: #{self_attention.1} parent=39 // pred_fallthru
          _
        %p821 = scmp.lt.s32.totalorder %s26, 0
        %s822 = scalar_select %p821, %s26, 0
        %s823 = smul.addr %s822, 8
        %s824 = scalar_lea.vmem %s5, %s823
        // Predicated region
        $region57: #{self_attention.1} parent=39 // pred_check
          %p825 = pneg %p177
        $region58: #{self_attention.1} parent=39 // pred_check_branch
          %827 = sbr.rel (%p825) target = $region60
        $region59: #{self_attention.1} parent=39 // pred_region
          _
        $region60: #{self_attention.1} parent=39 // pred_fallthru
          _
        // Predicated region
        $region61: #{self_attention.1} parent=39 // pred_check
          %p828 = pneg %p177
        $region62: #{self_attention.1} parent=39 // pred_check_branch
          %830 = sbr.rel (%p828) target = $region64
        $region63: #{self_attention.1} parent=39 // pred_region
          %p831 = scmp.lt.s32.totalorder %s26, 0
          %s832 = scalar_select %p831, %s26, 0
          %s833 = smul.addr %s832, 8
          %s834 = scalar_lea.vmem %s5, %s833
        $region64: #{self_attention.1} parent=39 // pred_fallthru
          _
      $region40: #{self_attention.1} parent=5 // pred_fallthru
        _
      %p835 = scmp.le.s32.totalorder 2, %s17
      // Predicated region
      $region65: #{self_attention.1} parent=5 // pred_check
        %p836 = pneg %p835
      $region66: #{self_attention.1} parent=5 // pred_check_branch
        %838 = sbr.rel (%p836) target = $region68
      $region67: #{self_attention.1} parent=5 // pred_region
        %s839 = ssub.s32 %s17, 2
      $region68: #{self_attention.1} parent=5 // pred_fallthru
        _
    $region6: #{self_attention.1} parent=1 // loop_footer
      %s21 = sadd.s32 1, %s17
    $region7: #{self_attention.1} parent=1 // loop_footer_branch
      %16 = sbr.rel target = $region3
    $region8: #{self_attention.1} parent=1 // loop_exit
      _
    %840 = vsyncpa [#allocation3], 1
    %s841 = scalar_lea.sflag [#allocation3], 1
    %842 = vsyncpa %s841, 1
    %843 = vsyncpa [#allocation5], 1
    %s844 = scalar_lea.sflag [#allocation5], 1
    %845 = vsyncpa %s844, 1

</llo_original>
